<compile_context>
chip_gen: v5e
topology: v5e:2x2
jax: 0.10.0
libtpu: 0.0.40
codegen_flags: <defaults>
</compile_context>

<pallas_src>
import functools

import jax
import jax.numpy as jnp
from jax.experimental import pallas as pl
from jax.experimental.pallas import tpu as pltpu


def mha_kernel(x_ref, wqkv_ref, bqkv_ref, wo_ref, bo_ref, o_ref, *,
               num_heads, scale):
    """One batch element (sequence) per grid step.

    x_ref    : [S, E]      (batch dim squeezed away by the BlockSpec)
    wqkv_ref : [3H, E, D]  q-heads | k-heads | v-heads stacked on the major axis
    bqkv_ref : [3H, 1, D]
    wo_ref   : [H, D, E]   output projection, one [D, E] slab per head
    bo_ref   : [1, E]
    o_ref    : [S, E]
    """
    H = num_heads
    x = x_ref[...]                                              # [S, E]
    S, E = x.shape
    G = 3 * H

    # Fused, head-batched QKV projection: one einsum, no lane-offset slicing.
    xg = jnp.broadcast_to(x, (G, S, E))                         # [3H, S, E]
    qkv = jnp.einsum('gse,ged->gsd', xg, wqkv_ref[...],
                     preferred_element_type=jnp.float32) + bqkv_ref[...]  # [3H,S,D]

    # Head selection = static major-axis slices (no cross-lane relayout).
    q = qkv[0:H]                                                # [H, S, D]
    k = qkv[H:2 * H]                                            # [H, S, D]
    v = qkv[2 * H:3 * H]                                        # [H, S, D]

    # Head-batched attention scores + numerically stable (exact) softmax.
    s = jnp.einsum('hqd,hkd->hqk', q, k,
                   preferred_element_type=jnp.float32) * scale  # [H, S, S]
    m = jnp.max(s, axis=-1, keepdims=True)
    e = jnp.exp(s - m)
    attn = e / jnp.sum(e, axis=-1, keepdims=True)               # [H, S, S]

    z = jnp.einsum('hqk,hkd->hqd', attn, v,
                   preferred_element_type=jnp.float32)          # [H, S, D]

    # Output projection as a sum over heads (replaces concat + [S,HD]@[HD,E]);
    # single full-tile store of the output.
    zo = jnp.einsum('hqd,hde->hqe', z, wo_ref[...],
                    preferred_element_type=jnp.float32)         # [H, S, E]
    o_ref[...] = jnp.sum(zo, axis=0) + bo_ref[...]


def prepare_params(params):
    """One-time layout prep -- run at parameter-load time, NOT per forward call."""
    H, D, E = params["wq"].shape                  # PyTorch Linear weight: [out, in]
    # x @ W.T layout: store [E, D] per head.
    wq = jnp.transpose(params["wq"], (0, 2, 1))                 # [H, E, D]
    wk = jnp.transpose(params["wk"], (0, 2, 1))
    wv = jnp.transpose(params["wv"], (0, 2, 1))
    w_qkv = jnp.concatenate([wq, wk, wv], axis=0)               # [3H, E, D]
    b_qkv = jnp.concatenate([params["bq"], params["bk"], params["bv"]],
                            axis=0)[:, None, :]                 # [3H, 1, D]
    # wo: [E, H*D]; wo.T rows h*D:(h+1)*D belong to head h -> [H, D, E].
    w_o = params["wo"].T.reshape(H, D, E)                       # [H, D, E]
    b_o = params["bo"].reshape(1, E)                            # [1, E]
    # NOTE: at realistic sizes, cast x / w_qkv / w_o to bfloat16 here (keep the
    # f32 accumulation via preferred_element_type and f32 softmax math).
    return dict(w_qkv=w_qkv, b_qkv=b_qkv, w_o=w_o, b_o=b_o,
                num_heads=H, head_dim=D)


def multihead_self_attention(x, fused):
    """x: [B, S, E] float32; fused: output of prepare_params()."""
    B, S, E = x.shape
    H = fused["num_heads"]
    D = fused["head_dim"]
    scale = 1.0 / (float(D) ** 0.5)

    kernel = functools.partial(mha_kernel, num_heads=H, scale=scale)
    resident3 = lambda b: (0, 0, 0)           # weights: same block every grid step

    return pl.pallas_call(
        kernel,
        out_shape=jax.ShapeDtypeStruct((B, S, E), jnp.float32),
        grid=(B,),
        in_specs=[
            pl.BlockSpec((None, S, E), lambda b: (b, 0, 0)),    # x   (per-batch tile)
            pl.BlockSpec((3 * H, E, D), resident3),             # w_qkv (VMEM-resident)
            pl.BlockSpec((3 * H, 1, D), resident3),             # b_qkv
            pl.BlockSpec((H, D, E), resident3),                 # w_o
            pl.BlockSpec((1, E), lambda b: (0, 0)),             # b_o
        ],
        out_specs=pl.BlockSpec((None, S, E), lambda b: (b, 0, 0)),
        compiler_params=pltpu.CompilerParams(
            dimension_semantics=("parallel",)),                 # megacore on v7x
    )(x, fused["w_qkv"], fused["b_qkv"], fused["w_o"], fused["b_o"])


def reference(x, params):
    """Pure-JAX reference mirroring the PyTorch forward (vmapped over batch)."""
    H, D, _ = params["wq"].shape

    def one(xb):
        zs = []
        for h in range(H):
            q = xb @ params["wq"][h].T + params["bq"][h]
            k = xb @ params["wk"][h].T + params["bk"][h]
            v = xb @ params["wv"][h].T + params["bv"][h]
            s = (q @ k.T) / (D ** 0.5)
            a = jax.nn.softmax(s, axis=-1)
            zs.append(a @ v)
        z = jnp.concatenate(zs, axis=1)               # torch.cat(..., dim=1)
        return z @ params["wo"].T + params["bo"]

    return jax.vmap(one)(x)


if __name__ == "__main__":
    embedding_dim = 32
    num_heads = 4
    attention_head_dim = 8
    seq_len = 8
    batch = 4

    H, E, D, S, B = num_heads, embedding_dim, attention_head_dim, seq_len, batch
    key = jax.random.PRNGKey(0)
    keys = jax.random.split(key, 9)

    # PyTorch nn.Linear layouts: weight [out_features, in_features], bias [out]
    params = {
        "wq": 0.1 * jax.random.normal(keys[0], (H, D, E), jnp.float32),
        "bq": 0.1 * jax.random.normal(keys[1], (H, D), jnp.float32),
        "wk": 0.1 * jax.random.normal(keys[2], (H, D, E), jnp.float32),
        "bk": 0.1 * jax.random.normal(keys[3], (H, D), jnp.float32),
        "wv": 0.1 * jax.random.normal(keys[4], (H, D, E), jnp.float32),
        "bv": 0.1 * jax.random.normal(keys[5], (H, D), jnp.float32),
        "wo": 0.1 * jax.random.normal(keys[6], (E, H * D), jnp.float32),
        "bo": 0.1 * jax.random.normal(keys[7], (E,), jnp.float32),
    }

    x = jax.random.normal(keys[8], (B, S, E), jnp.float32)

    fused = prepare_params(params)            # one-time prep, outside the hot path
    out = multihead_self_attention(x, fused)
    out = jax.block_until_ready(out)

    ref = reference(x, params)
    assert out.shape == (B, S, E)
    assert jnp.allclose(out, ref, rtol=1e-3, atol=1e-3), "mismatch vs reference"

    print("KERNEL_OK")
</pallas_src>

<mosaic_0001>
module attributes {stable_mosaic.version = 11 : i64} {
  func.func @mha_kernel(%arg0: i32, %arg1: memref<1x8x32xf32, #tpu.memory_space<vmem>>, %arg2: memref<12x32x8xf32, #tpu.memory_space<vmem>>, %arg3: memref<12x1x8xf32, #tpu.memory_space<vmem>>, %arg4: memref<4x8x32xf32, #tpu.memory_space<vmem>>, %arg5: memref<1x32xf32, #tpu.memory_space<vmem>>, %arg6: memref<1x8x32xf32, #tpu.memory_space<vmem>>) attributes {dimension_semantics = [#tpu.dimension_semantics<parallel>], iteration_bounds = array<i64: 4>, scalar_prefetch = 0 : i64, scratch_operands = 0 : i64, tpu.core_type = #tpu.core_type<tc>, window_params = [{transform_indices = @transform_0, window_bounds = array<i64: 1, 8, 32>}, {pipeline_mode = #tpu.pipeline_mode<synchronous>, transform_indices = @transform_1, window_bounds = array<i64: 12, 32, 8>}, {pipeline_mode = #tpu.pipeline_mode<synchronous>, transform_indices = @transform_2, window_bounds = array<i64: 12, 1, 8>}, {pipeline_mode = #tpu.pipeline_mode<synchronous>, transform_indices = @transform_3, window_bounds = array<i64: 4, 8, 32>}, {pipeline_mode = #tpu.pipeline_mode<synchronous>, transform_indices = @transform_4, window_bounds = array<i64: 1, 32>}, {transform_indices = @transform_5, window_bounds = array<i64: 1, 8, 32>}]} {
    %c0 = arith.constant 0 : index
    %c0_0 = arith.constant 0 : index
    %c0_1 = arith.constant 0 : index
    %0 = vector.load %arg1[%c0, %c0_0, %c0_1] : memref<1x8x32xf32, #tpu.memory_space<vmem>>, vector<1x8x32xf32>
    %1 = vector.shape_cast %0 : vector<1x8x32xf32> to vector<8x32xf32>
    %2 = vector.shape_cast %1 : vector<8x32xf32> to vector<1x8x32xf32>
    %3 = vector.broadcast %2 : vector<1x8x32xf32> to vector<12x8x32xf32>
    %c0_2 = arith.constant 0 : index
    %c0_3 = arith.constant 0 : index
    %c0_4 = arith.constant 0 : index
    %4 = vector.load %arg2[%c0_2, %c0_3, %c0_4] : memref<12x32x8xf32, #tpu.memory_space<vmem>>, vector<12x32x8xf32>
    "tpu.trace_start"() <{level = 10 : i32, message = "gse,ged->gsd"}> : () -> ()
    %cst = arith.constant dense<0.000000e+00> : vector<12x8x8xf32>
    %5 = tpu.matmul %3, %4, %cst {dimension_numbers = #tpu.dot_dimension_numbers<[2], [1], [1], [2], [0, 0, 0, 1, 1, 2], [0], [0]>} : vector<12x8x32xf32>, vector<12x32x8xf32>, vector<12x8x8xf32> -> vector<12x8x8xf32>
    "tpu.trace_stop"() : () -> ()
    %c0_5 = arith.constant 0 : index
    %c0_6 = arith.constant 0 : index
    %c0_7 = arith.constant 0 : index
    %6 = vector.load %arg3[%c0_5, %c0_6, %c0_7] : memref<12x1x8xf32, #tpu.memory_space<vmem>>, vector<12x1x8xf32>
    %7 = vector.broadcast %6 : vector<12x1x8xf32> to vector<12x8x8xf32>
    %8 = arith.addf %5, %7 : vector<12x8x8xf32>
    %9 = vector.extract_strided_slice %8 {offsets = [0, 0, 0], sizes = [4, 8, 8], strides = [1, 1, 1]} : vector<12x8x8xf32> to vector<4x8x8xf32>
    %10 = vector.extract_strided_slice %8 {offsets = [4, 0, 0], sizes = [4, 8, 8], strides = [1, 1, 1]} : vector<12x8x8xf32> to vector<4x8x8xf32>
    %11 = vector.extract_strided_slice %8 {offsets = [8, 0, 0], sizes = [4, 8, 8], strides = [1, 1, 1]} : vector<12x8x8xf32> to vector<4x8x8xf32>
    "tpu.trace_start"() <{level = 10 : i32, message = "hqd,hkd->hqk"}> : () -> ()
    %cst_8 = arith.constant dense<0.000000e+00> : vector<4x8x8xf32>
    %12 = tpu.matmul %9, %10, %cst_8 {dimension_numbers = #tpu.dot_dimension_numbers<[2], [2], [1], [1], [0, 0, 0, 1, 1, 1], [0], [0]>} : vector<4x8x8xf32>, vector<4x8x8xf32>, vector<4x8x8xf32> -> vector<4x8x8xf32>
    "tpu.trace_stop"() : () -> ()
    %cst_9 = arith.constant 0.353553385 : f32
    %13 = vector.broadcast %cst_9 : f32 to vector<4x8x8xf32>
    %14 = arith.mulf %12, %13 : vector<4x8x8xf32>
    %cst_10 = arith.constant dense<0xFF800000> : vector<4x8xf32>
    %15 = vector.multi_reduction <maximumf>, %14, %cst_10 [2] : vector<4x8x8xf32> to vector<4x8xf32>
    %16 = vector.shape_cast %15 : vector<4x8xf32> to vector<4x8x1xf32>
    %17 = vector.broadcast %16 : vector<4x8x1xf32> to vector<4x8x8xf32>
    %18 = arith.subf %14, %17 : vector<4x8x8xf32>
    %19 = math.exp %18 : vector<4x8x8xf32>
    %cst_11 = arith.constant dense<0.000000e+00> : vector<4x8xf32>
    %20 = vector.multi_reduction <add>, %19, %cst_11 [2] : vector<4x8x8xf32> to vector<4x8xf32>
    %21 = vector.shape_cast %20 : vector<4x8xf32> to vector<4x8x1xf32>
    %22 = vector.broadcast %21 : vector<4x8x1xf32> to vector<4x8x8xf32>
    %23 = arith.divf %19, %22 : vector<4x8x8xf32>
    "tpu.trace_start"() <{level = 10 : i32, message = "hqk,hkd->hqd"}> : () -> ()
    %cst_12 = arith.constant dense<0.000000e+00> : vector<4x8x8xf32>
    %24 = tpu.matmul %23, %11, %cst_12 {dimension_numbers = #tpu.dot_dimension_numbers<[2], [1], [1], [2], [0, 0, 0, 1, 1, 2], [0], [0]>} : vector<4x8x8xf32>, vector<4x8x8xf32>, vector<4x8x8xf32> -> vector<4x8x8xf32>
    "tpu.trace_stop"() : () -> ()
    %c0_13 = arith.constant 0 : index
    %c0_14 = arith.constant 0 : index
    %c0_15 = arith.constant 0 : index
    %25 = vector.load %arg4[%c0_13, %c0_14, %c0_15] : memref<4x8x32xf32, #tpu.memory_space<vmem>>, vector<4x8x32xf32>
    "tpu.trace_start"() <{level = 10 : i32, message = "hqd,hde->hqe"}> : () -> ()
    %cst_16 = arith.constant dense<0.000000e+00> : vector<4x8x32xf32>
    %26 = tpu.matmul %24, %25, %cst_16 {dimension_numbers = #tpu.dot_dimension_numbers<[2], [1], [1], [2], [0, 0, 0, 1, 1, 2], [0], [0]>} : vector<4x8x8xf32>, vector<4x8x32xf32>, vector<4x8x32xf32> -> vector<4x8x32xf32>
    "tpu.trace_stop"() : () -> ()
    %cst_17 = arith.constant dense<0.000000e+00> : vector<8x32xf32>
    %27 = vector.multi_reduction <add>, %26, %cst_17 [0] : vector<4x8x32xf32> to vector<8x32xf32>
    %c0_18 = arith.constant 0 : index
    %c0_19 = arith.constant 0 : index
    %28 = vector.load %arg5[%c0_18, %c0_19] : memref<1x32xf32, #tpu.memory_space<vmem>>, vector<1x32xf32>
    %29 = vector.broadcast %28 : vector<1x32xf32> to vector<8x32xf32>
    %30 = arith.addf %27, %29 : vector<8x32xf32>
    %c0_20 = arith.constant 0 : index
    %c0_21 = arith.constant 0 : index
    %c0_22 = arith.constant 0 : index
    %31 = vector.load %arg6[%c0_20, %c0_21, %c0_22] : memref<1x8x32xf32, #tpu.memory_space<vmem>>, vector<1x8x32xf32>
    %32 = vector.shape_cast %31 : vector<1x8x32xf32> to vector<8x32xf32>
    %33 = vector.shape_cast %30 : vector<8x32xf32> to vector<1x8x32xf32>
    tpu.vector_store %arg6[%c0_20, %c0_21, %c0_22], %33 {strides = array<i32>} : memref<1x8x32xf32, #tpu.memory_space<vmem>>, vector<1x8x32xf32>,
    return
  }
  func.func @transform_0(%arg0: i32) -> (i32, i32, i32) {
    %c0_i32 = arith.constant 0 : i32
    %c0_i32_0 = arith.constant 0 : i32
    %c0_i32_1 = arith.constant 0 : i32
    return %arg0, %c0_i32, %c0_i32_0 : i32, i32, i32
  }
  func.func @transform_1(%arg0: i32) -> (i32, i32, i32) {
    %c0_i32 = arith.constant 0 : i32
    %c0_i32_0 = arith.constant 0 : i32
    %c0_i32_1 = arith.constant 0 : i32
    %c0_i32_2 = arith.constant 0 : i32
    return %c0_i32, %c0_i32_0, %c0_i32_1 : i32, i32, i32
  }
  func.func @transform_2(%arg0: i32) -> (i32, i32, i32) {
    %c0_i32 = arith.constant 0 : i32
    %c0_i32_0 = arith.constant 0 : i32
    %c0_i32_1 = arith.constant 0 : i32
    %c0_i32_2 = arith.constant 0 : i32
    return %c0_i32, %c0_i32_0, %c0_i32_1 : i32, i32, i32
  }
  func.func @transform_3(%arg0: i32) -> (i32, i32, i32) {
    %c0_i32 = arith.constant 0 : i32
    %c0_i32_0 = arith.constant 0 : i32
    %c0_i32_1 = arith.constant 0 : i32
    %c0_i32_2 = arith.constant 0 : i32
    return %c0_i32, %c0_i32_0, %c0_i32_1 : i32, i32, i32
  }
  func.func @transform_4(%arg0: i32) -> (i32, i32) {
    %c0_i32 = arith.constant 0 : i32
    %c0_i32_0 = arith.constant 0 : i32
    %c0_i32_1 = arith.constant 0 : i32
    return %c0_i32, %c0_i32_0 : i32, i32
  }
  func.func @transform_5(%arg0: i32) -> (i32, i32, i32) {
    %c0_i32 = arith.constant 0 : i32
    %c0_i32_0 = arith.constant 0 : i32
    %c0_i32_1 = arith.constant 0 : i32
    return %arg0, %c0_i32, %c0_i32_0 : i32, i32, i32
  }
}

</mosaic_0001>

<llo_original>
// kernel: tpu_custom_call.1
$region0: #{tpu_custom_call.1}
  #allocation0 [shape = 'u32[]', space=smem, size = 0x4, offset = 0x4, fixed_abs, tag = 'smem constant byte address 0x4 - core index']
  #allocation1 [shape = 'u32[72,128]{1,0:T(1,128)}', space=vmem, size = 0x9000, scoped, tag = 'internal scratch']
  %s0 = inlined_call_operand.vmem [shape: f32[4,8,32], index: 0, kind: input, shape index: {}]
  %s1 = inlined_call_operand.vmem [shape: f32[12,32,8], index: 1, kind: input, shape index: {}]
  %s2 = inlined_call_operand.vmem [shape: f32[12,1,8], index: 2, kind: input, shape index: {}]
  %s3 = inlined_call_operand.vmem [shape: f32[4,8,32], index: 3, kind: input, shape index: {}]
  %s4 = inlined_call_operand.vmem [shape: f32[1,32], index: 4, kind: input, shape index: {}]
  %s5 = inlined_call_operand.hbm [shape: f32[4,8,32], index: 5, kind: output, shape index: {}]
  %s6 = sld [smem:[#allocation0]]
  $region53: #{tpu_custom_call.1} parent=0
    _
  %s8 = ssub.s32 1, %s6
  %s9 = scalar_select 0, %s8, %s6
  $region1: #{tpu_custom_call.1} parent=0
    #allocation2 [shape = 'u8[8192]{0}', space=vmem, size = 0x2000, scoped, tag = 'output window, operand 0']
    #allocation3 [shape = 's32[2]{0}', space=sflag, size = 0x8, scoped, tag = 'scoped memory for tpu_custom_call.1']
    %10 = vsyncpa [#allocation3], 0
    %s11 = scalar_lea.sflag [#allocation3], 1
    %12 = vsyncpa %s11, 0
    loop: start=0, step=1, limit=6
    $region2: #{tpu_custom_call.1} parent=1 // loop_pre_header
      _
    $region3: #{tpu_custom_call.1} parent=1 // loop_header
      %s14 = sphi 0, %s18
      %p15 = scmp.ge.s32.totalorder %s14, 6
      %s24 = sphi 0, %s26
      %s27 = sphi 0, %s24
      %s28 = sphi 0, %s27
      %s44 = sphi 0, %s28
      %s48 = sphi 0, %s48
      %s50 = sphi 0, %s48
      %s51 = sphi 0, %s50
      %s65 = sphi 0, %s51
      %s69 = sphi 0, %s69
      %s71 = sphi 0, %s69
      %s72 = sphi 0, %s71
      %s86 = sphi 0, %s72
      %s90 = sphi 0, %s90
      %s92 = sphi 0, %s90
      %s93 = sphi 0, %s92
      %s107 = sphi 0, %s93
      %s111 = sphi 0, %s111
      %s113 = sphi 0, %s111
      %s114 = sphi 0, %s113
      %s128 = sphi 0, %s114
      %s134 = sphi 0, %s136
      %s137 = sphi 0, %s134
      %s138 = sphi 0, %s137
      %s154 = sphi 0, %s138
    $region4: #{tpu_custom_call.1} parent=1 // loop_header_branch
      %17 = sbr.rel (%p15) target = $region8
    $region5: #{tpu_custom_call.1} parent=1 // loop_body
      %s19 = ssub.s32 %s14, 1
      %s20 = ssub.s32 %s14, 2
      %s21 = sadd.s32 %s14, 1
      %s22 = ssub.s32 %s14, %s21
      %p23 = scmp.eq.s32.totalorder %s22, 0
      %s25 = sadd.s32 %s24, 1
      %s26 = scalar_select %p23, %s24, %s25
      %p29 = pneg %p23
      %p30 = scmp.eq.s32.totalorder %s14, 3
      %p31 = por %p29, %p30
      %p32 = scmp.ne.s32.totalorder %s24, %s27
      %p33 = scmp.eq.s32.totalorder %s14, 0
      %p34 = por %p32, %p33
      %p35 = scmp.ne.s32.totalorder %s24, %s27
      %p36 = scmp.eq.s32.totalorder %s19, 3
      %p37 = por %p35, %p36
      %p38 = scmp.ne.s32.totalorder %s27, %s28
      %p39 = scmp.eq.s32.totalorder %s19, 0
      %p40 = por %p38, %p39
      %p41 = scmp.ne.s32.totalorder %s27, %s28
      %p42 = scmp.eq.s32.totalorder %s20, 3
      %p43 = por %p41, %p42
      %p45 = scmp.ne.s32.totalorder %s28, %s44
      %p46 = scmp.eq.s32.totalorder %s20, 0
      %p47 = por %p45, %p46
      %s49 = sadd.s32 %s48, 1
      %p52 = scmp.eq.s32.totalorder %s14, 3
      %p53 = scmp.ne.s32.totalorder %s48, %s50
      %p54 = scmp.eq.s32.totalorder %s14, 0
      %p55 = por %p53, %p54
      %p56 = scmp.ne.s32.totalorder %s48, %s50
      %p57 = scmp.eq.s32.totalorder %s19, 3
      %p58 = por %p56, %p57
      %p59 = scmp.ne.s32.totalorder %s50, %s51
      %p60 = scmp.eq.s32.totalorder %s19, 0
      %p61 = por %p59, %p60
      %p62 = scmp.ne.s32.totalorder %s50, %s51
      %p63 = scmp.eq.s32.totalorder %s20, 3
      %p64 = por %p62, %p63
      %p66 = scmp.ne.s32.totalorder %s51, %s65
      %p67 = scmp.eq.s32.totalorder %s20, 0
      %p68 = por %p66, %p67
      %s70 = sadd.s32 %s69, 1
      %p73 = scmp.eq.s32.totalorder %s14, 3
      %p74 = scmp.ne.s32.totalorder %s69, %s71
      %p75 = scmp.eq.s32.totalorder %s14, 0
      %p76 = por %p74, %p75
      %p77 = scmp.ne.s32.totalorder %s69, %s71
      %p78 = scmp.eq.s32.totalorder %s19, 3
      %p79 = por %p77, %p78
      %p80 = scmp.ne.s32.totalorder %s71, %s72
      %p81 = scmp.eq.s32.totalorder %s19, 0
      %p82 = por %p80, %p81
      %p83 = scmp.ne.s32.totalorder %s71, %s72
      %p84 = scmp.eq.s32.totalorder %s20, 3
      %p85 = por %p83, %p84
      %p87 = scmp.ne.s32.totalorder %s72, %s86
      %p88 = scmp.eq.s32.totalorder %s20, 0
      %p89 = por %p87, %p88
      %s91 = sadd.s32 %s90, 1
      %p94 = scmp.eq.s32.totalorder %s14, 3
      %p95 = scmp.ne.s32.totalorder %s90, %s92
      %p96 = scmp.eq.s32.totalorder %s14, 0
      %p97 = por %p95, %p96
      %p98 = scmp.ne.s32.totalorder %s90, %s92
      %p99 = scmp.eq.s32.totalorder %s19, 3
      %p100 = por %p98, %p99
      %p101 = scmp.ne.s32.totalorder %s92, %s93
      %p102 = scmp.eq.s32.totalorder %s19, 0
      %p103 = por %p101, %p102
      %p104 = scmp.ne.s32.totalorder %s92, %s93
      %p105 = scmp.eq.s32.totalorder %s20, 3
      %p106 = por %p104, %p105
      %p108 = scmp.ne.s32.totalorder %s93, %s107
      %p109 = scmp.eq.s32.totalorder %s20, 0
      %p110 = por %p108, %p109
      %s112 = sadd.s32 %s111, 1
      %p115 = scmp.eq.s32.totalorder %s14, 3
      %p116 = scmp.ne.s32.totalorder %s111, %s113
      %p117 = scmp.eq.s32.totalorder %s14, 0
      %p118 = por %p116, %p117
      %p119 = scmp.ne.s32.totalorder %s111, %s113
      %p120 = scmp.eq.s32.totalorder %s19, 3
      %p121 = por %p119, %p120
      %p122 = scmp.ne.s32.totalorder %s113, %s114
      %p123 = scmp.eq.s32.totalorder %s19, 0
      %p124 = por %p122, %p123
      %p125 = scmp.ne.s32.totalorder %s113, %s114
      %p126 = scmp.eq.s32.totalorder %s20, 3
      %p127 = por %p125, %p126
      %p129 = scmp.ne.s32.totalorder %s114, %s128
      %p130 = scmp.eq.s32.totalorder %s20, 0
      %p131 = por %p129, %p130
      %s132 = ssub.s32 %s14, %s21
      %p133 = scmp.eq.s32.totalorder %s132, 0
      %s135 = sadd.s32 %s134, 1
      %s136 = scalar_select %p133, %s134, %s135
      %p139 = pneg %p133
      %p140 = scmp.eq.s32.totalorder %s14, 3
      %p141 = por %p139, %p140
      %p142 = scmp.ne.s32.totalorder %s134, %s137
      %p143 = scmp.eq.s32.totalorder %s14, 0
      %p144 = por %p142, %p143
      %p145 = scmp.ne.s32.totalorder %s134, %s137
      %p146 = scmp.eq.s32.totalorder %s19, 3
      %p147 = por %p145, %p146
      %p148 = scmp.ne.s32.totalorder %s137, %s138
      %p149 = scmp.eq.s32.totalorder %s19, 0
      %p150 = por %p148, %p149
      %p151 = scmp.ne.s32.totalorder %s137, %s138
      %p152 = scmp.eq.s32.totalorder %s20, 3
      %p153 = por %p151, %p152
      %p155 = scmp.ne.s32.totalorder %s138, %s154
      %p156 = scmp.eq.s32.totalorder %s20, 0
      %p157 = por %p155, %p156
      %p158 = scmp.le.s32.totalorder 1, %s14
      %p159 = scmp.lt.s32.totalorder %s14, 5
      %p160 = pnand %p158, %p159
      %p161 = pneg %p160
      // Predicated region
      $region9: #{tpu_custom_call.1} parent=5 // pred_check
        _
      $region10: #{tpu_custom_call.1} parent=5 // pred_check_branch
        %163 = sbr.rel (%p160) target = $region12
      $region11: #{tpu_custom_call.1} parent=5 // pred_region
        %s164 = ssub.s32 %s14, 1
        // Predicated region
        $region13: #{tpu_custom_call.1} parent=11 // pred_check
          %p165 = pneg %p61
        $region14: #{tpu_custom_call.1} parent=11 // pred_check_branch
          %167 = sbr.rel (%p165) target = $region16
        $region15: #{tpu_custom_call.1} parent=11 // pred_region
          _
        $region16: #{tpu_custom_call.1} parent=11 // pred_fallthru
          _
        // Predicated region
        $region17: #{tpu_custom_call.1} parent=11 // pred_check
          %p168 = pneg %p82
        $region18: #{tpu_custom_call.1} parent=11 // pred_check_branch
          %170 = sbr.rel (%p168) target = $region20
        $region19: #{tpu_custom_call.1} parent=11 // pred_region
          _
        $region20: #{tpu_custom_call.1} parent=11 // pred_fallthru
          _
        // Predicated region
        $region21: #{tpu_custom_call.1} parent=11 // pred_check
          %p171 = pneg %p103
        $region22: #{tpu_custom_call.1} parent=11 // pred_check_branch
          %173 = sbr.rel (%p171) target = $region24
        $region23: #{tpu_custom_call.1} parent=11 // pred_region
          _
        $region24: #{tpu_custom_call.1} parent=11 // pred_fallthru
          _
        // Predicated region
        $region25: #{tpu_custom_call.1} parent=11 // pred_check
          %p174 = pneg %p124
        $region26: #{tpu_custom_call.1} parent=11 // pred_check_branch
          %176 = sbr.rel (%p174) target = $region28
        $region27: #{tpu_custom_call.1} parent=11 // pred_region
          _
        $region28: #{tpu_custom_call.1} parent=11 // pred_fallthru
          _
      $region12: #{tpu_custom_call.1} parent=5 // pred_fallthru
        _
      %p177 = scmp.lt.s32.totalorder %s14, 4
      // Predicated region
      $region29: #{tpu_custom_call.1} parent=5 // pred_check
        %p178 = pneg %p177
      $region30: #{tpu_custom_call.1} parent=5 // pred_check_branch
        %180 = sbr.rel (%p178) target = $region32
      $region31: #{tpu_custom_call.1} parent=5 // pred_region
        // Predicated region
        $region33: #{tpu_custom_call.1} parent=31 // pred_check
          %p181 = pneg %p34
        $region34: #{tpu_custom_call.1} parent=31 // pred_check_branch
          %183 = sbr.rel (%p181) target = $region36
        $region35: #{tpu_custom_call.1} parent=31 // pred_region
          %p184 = scmp.lt.s32.totalorder %s14, 3
          %s185 = scalar_select %p184, %s14, 3
          %s186 = smul.addr %s185, 8
          %s187 = scalar_lea.vmem %s0, %s186
        $region36: #{tpu_custom_call.1} parent=31 // pred_fallthru
          _
      $region32: #{tpu_custom_call.1} parent=5 // pred_fallthru
        _
      %p188 = scmp.le.s32.totalorder 1, %s14
      %p189 = scmp.lt.s32.totalorder %s14, 5
      %p190 = pnand %p188, %p189
      %p191 = pneg %p190
      // Predicated region
      $region37: #{tpu_custom_call.1} parent=5 // pred_check
        _
      $region38: #{tpu_custom_call.1} parent=5 // pred_check_branch
        %193 = sbr.rel (%p190) target = $region40
      $region39: #{tpu_custom_call.1} parent=5 // pred_region
        %s194 = ssub.s32 %s14, 1
        %p195 = scmp.lt.s32.totalorder %s19, 3
        %s196 = scalar_select %p195, %s19, 3
        %s197 = smul.addr %s196, 8
        %s198 = scalar_lea.vmem %s0, %s197
        %p199 = pneg %p40
        %p200 = pneg %p37
        %p201 = pneg %p61
        %p202 = pneg %p58
        %p203 = pneg %p82
        %p204 = pneg %p79
        %p205 = pneg %p103
        %p206 = pneg %p100
        %p207 = pneg %p124
        %p208 = pneg %p121
        %p209 = pneg %p150
        %p210 = pneg %p147
        %s211 = sand.u32 %s137, 1
        %s212 = scalar_lea.sflag [#allocation3], %s211
        %s213 = sand.u32 %s137, 1
        %s214 = smul.addr %s213, 8
        %s215 = scalar_lea.vmem [#allocation2], %s214
        %p216 = scmp.lt.s32.totalorder %s19, 3
        %s217 = scalar_select %p216, %s19, 3
        %s218 = smul.addr %s217, 8
        %s219 = scalar_lea.vmem %s0, %s218
        %v220 = vld [vmem:[%s219] sm:$0xff]
        %v221 = vld [vmem:[%s1] sm:$0xff]
        %v222 = vld [vmem:[%s1 + $0x8] sm:$0xff]
        %v223 = vld [vmem:[%s1 + $0x10] sm:$0xff]
        %v224 = vld [vmem:[%s1 + $0x18] sm:$0xff]
        %v225 = vld [vmem:[%s1 + $0x20] sm:$0xff]
        %v226 = vld [vmem:[%s1 + $0x28] sm:$0xff]
        %v227 = vld [vmem:[%s1 + $0x30] sm:$0xff]
        %v228 = vld [vmem:[%s1 + $0x38] sm:$0xff]
        %v229 = vld [vmem:[%s1 + $0x40] sm:$0xff]
        %v230 = vld [vmem:[%s1 + $0x48] sm:$0xff]
        %v231 = vld [vmem:[%s1 + $0x50] sm:$0xff]
        %v232 = vld [vmem:[%s1 + $0x58] sm:$0xff]
        %v233 = vld [vmem:[%s1 + $0x60] sm:$0xff]
        %v234 = vld [vmem:[%s1 + $0x68] sm:$0xff]
        %v235 = vld [vmem:[%s1 + $0x70] sm:$0xff]
        %v236 = vld [vmem:[%s1 + $0x78] sm:$0xff]
        %v237 = vld [vmem:[%s1 + $0x80] sm:$0xff]
        %v238 = vld [vmem:[%s1 + $0x88] sm:$0xff]
        %v239 = vld [vmem:[%s1 + $0x90] sm:$0xff]
        %v240 = vld [vmem:[%s1 + $0x98] sm:$0xff]
        %v241 = vld [vmem:[%s1 + $0xa0] sm:$0xff]
        %v242 = vld [vmem:[%s1 + $0xa8] sm:$0xff]
        %v243 = vld [vmem:[%s1 + $0xb0] sm:$0xff]
        %v244 = vld [vmem:[%s1 + $0xb8] sm:$0xff]
        %v245 = vld [vmem:[%s1 + $0xc0] sm:$0xff]
        %v246 = vld [vmem:[%s1 + $0xc8] sm:$0xff]
        %v247 = vld [vmem:[%s1 + $0xd0] sm:$0xff]
        %v248 = vld [vmem:[%s1 + $0xd8] sm:$0xff]
        %v249 = vld [vmem:[%s1 + $0xe0] sm:$0xff]
        %v250 = vld [vmem:[%s1 + $0xe8] sm:$0xff]
        %v251 = vld [vmem:[%s1 + $0xf0] sm:$0xff]
        %v252 = vld [vmem:[%s1 + $0xf8] sm:$0xff]
        %v253 = vld [vmem:[%s1 + $0x100] sm:$0xff]
        %v254 = vld [vmem:[%s1 + $0x108] sm:$0xff]
        %v255 = vld [vmem:[%s1 + $0x110] sm:$0xff]
        %v256 = vld [vmem:[%s1 + $0x118] sm:$0xff]
        %v257 = vld [vmem:[%s1 + $0x120] sm:$0xff]
        %v258 = vld [vmem:[%s1 + $0x128] sm:$0xff]
        %v259 = vld [vmem:[%s1 + $0x130] sm:$0xff]
        %v260 = vld [vmem:[%s1 + $0x138] sm:$0xff]
        %v261 = vld [vmem:[%s1 + $0x140] sm:$0xff]
        %v262 = vld [vmem:[%s1 + $0x148] sm:$0xff]
        %v263 = vld [vmem:[%s1 + $0x150] sm:$0xff]
        %v264 = vld [vmem:[%s1 + $0x158] sm:$0xff]
        %v265 = vld [vmem:[%s1 + $0x160] sm:$0xff]
        %v266 = vld [vmem:[%s1 + $0x168] sm:$0xff]
        %v267 = vld [vmem:[%s1 + $0x170] sm:$0xff]
        %v268 = vld [vmem:[%s1 + $0x178] sm:$0xff]
        %v269 = vld [vmem:[%s2] sm:$0x1]
        %v270 = vld [vmem:[%s2 + $0x1] sm:$0x1]
        %v271 = vld [vmem:[%s2 + $0x2] sm:$0x1]
        %v272 = vld [vmem:[%s2 + $0x3] sm:$0x1]
        %v273 = vld [vmem:[%s2 + $0x4] sm:$0x1]
        %v274 = vld [vmem:[%s2 + $0x5] sm:$0x1]
        %v275 = vld [vmem:[%s2 + $0x6] sm:$0x1]
        %v276 = vld [vmem:[%s2 + $0x7] sm:$0x1]
        %v277 = vld [vmem:[%s2 + $0x8] sm:$0x1]
        %v278 = vld [vmem:[%s2 + $0x9] sm:$0x1]
        %v279 = vld [vmem:[%s2 + $0xa] sm:$0x1]
        %v280 = vld [vmem:[%s2 + $0xb] sm:$0x1]
        %v293 = vperm.slane %v269, 0
        %v294 = vperm.slane %v270, 0
        %v295 = vperm.slane %v271, 0
        %v296 = vperm.slane %v272, 0
        %v297 = vperm.slane %v273, 0
        %v298 = vperm.slane %v274, 0
        %v299 = vperm.slane %v275, 0
        %v300 = vperm.slane %v276, 0
        %v301 = vperm.slane %v277, 0
        %v302 = vperm.slane %v278, 0
        %v303 = vperm.slane %v279, 0
        %v304 = vperm.slane %v280, 0
        %vm317 = vcmask 261120
        %v319 = vsel %vm317, %v220, 0
        %321 = vmatpush.msra.mxu0 0.0
        %322 = vmatpush.msra.mxu0 0.0
        %323 = vmatpush.msra.mxu0 0.0
        %324 = vmatpush.msra.mxu0 0.0
        %325 = vmatpush.msra.mxu0 0.0
        %326 = vmatpush.msra.mxu0 0.0
        %327 = vmatpush.msra.mxu0 0.0
        %328 = vmatpush.msra.mxu0 0.0
        %329 = vmatpush.msra.mxu0 0.0
        %330 = vmatpush.msra.mxu0 0.0
        %331 = vmatpush.msra.mxu0 0.0
        %332 = vmatpush.msra.mxu0 0.0
        %333 = vmatpush.msra.mxu0 %v224
        %334 = vmatpush.msra.mxu0 %v223
        %335 = vmatpush.msra.mxu0 %v222
        %336 = vmatpush.msra.mxu0 %v221
        %337 = vmatmul.f32.gmra.mxu0 %v319
        %v338 = vpop.f32.mrf.mxu0
        %v339 = vadd.f32 %v293, %v338
        %340 = vdwg.mxu0
        %341 = vmatpush.msra.mxu0 0.0
        %342 = vmatpush.msra.mxu0 0.0
        %343 = vmatpush.msra.mxu0 0.0
        %344 = vmatpush.msra.mxu0 0.0
        %345 = vmatpush.msra.mxu0 0.0
        %346 = vmatpush.msra.mxu0 0.0
        %347 = vmatpush.msra.mxu0 0.0
        %348 = vmatpush.msra.mxu0 0.0
        %349 = vmatpush.msra.mxu0 0.0
        %350 = vmatpush.msra.mxu0 0.0
        %351 = vmatpush.msra.mxu0 0.0
        %352 = vmatpush.msra.mxu0 0.0
        %353 = vmatpush.msra.mxu0 %v228
        %354 = vmatpush.msra.mxu0 %v227
        %355 = vmatpush.msra.mxu0 %v226
        %356 = vmatpush.msra.mxu0 %v225
        %357 = vmatmul.f32.gmra.mxu0 %v319
        %v358 = vpop.f32.mrf.mxu0
        %v359 = vadd.f32 %v294, %v358
        %360 = vdwg.mxu0
        %361 = vmatpush.msra.mxu0 0.0
        %362 = vmatpush.msra.mxu0 0.0
        %363 = vmatpush.msra.mxu0 0.0
        %364 = vmatpush.msra.mxu0 0.0
        %365 = vmatpush.msra.mxu0 0.0
        %366 = vmatpush.msra.mxu0 0.0
        %367 = vmatpush.msra.mxu0 0.0
        %368 = vmatpush.msra.mxu0 0.0
        %369 = vmatpush.msra.mxu0 0.0
        %370 = vmatpush.msra.mxu0 0.0
        %371 = vmatpush.msra.mxu0 0.0
        %372 = vmatpush.msra.mxu0 0.0
        %373 = vmatpush.msra.mxu0 %v232
        %374 = vmatpush.msra.mxu0 %v231
        %375 = vmatpush.msra.mxu0 %v230
        %376 = vmatpush.msra.mxu0 %v229
        %377 = vmatmul.f32.gmra.mxu0 %v319
        %v378 = vpop.f32.mrf.mxu0
        %v379 = vadd.f32 %v295, %v378
        %380 = vdwg.mxu0
        %381 = vmatpush.msra.mxu0 0.0
        %382 = vmatpush.msra.mxu0 0.0
        %383 = vmatpush.msra.mxu0 0.0
        %384 = vmatpush.msra.mxu0 0.0
        %385 = vmatpush.msra.mxu0 0.0
        %386 = vmatpush.msra.mxu0 0.0
        %387 = vmatpush.msra.mxu0 0.0
        %388 = vmatpush.msra.mxu0 0.0
        %389 = vmatpush.msra.mxu0 0.0
        %390 = vmatpush.msra.mxu0 0.0
        %391 = vmatpush.msra.mxu0 0.0
        %392 = vmatpush.msra.mxu0 0.0
        %393 = vmatpush.msra.mxu0 %v236
        %394 = vmatpush.msra.mxu0 %v235
        %395 = vmatpush.msra.mxu0 %v234
        %396 = vmatpush.msra.mxu0 %v233
        %397 = vmatmul.f32.gmra.mxu0 %v319
        %v398 = vpop.f32.mrf.mxu0
        %v399 = vadd.f32 %v296, %v398
        %400 = vdwg.mxu0
        %401 = vmatpush.msra.mxu0 0.0
        %402 = vmatpush.msra.mxu0 0.0
        %403 = vmatpush.msra.mxu0 0.0
        %404 = vmatpush.msra.mxu0 0.0
        %405 = vmatpush.msra.mxu0 0.0
        %406 = vmatpush.msra.mxu0 0.0
        %407 = vmatpush.msra.mxu0 0.0
        %408 = vmatpush.msra.mxu0 0.0
        %409 = vmatpush.msra.mxu0 0.0
        %410 = vmatpush.msra.mxu0 0.0
        %411 = vmatpush.msra.mxu0 0.0
        %412 = vmatpush.msra.mxu0 0.0
        %413 = vmatpush.msra.mxu0 %v240
        %414 = vmatpush.msra.mxu0 %v239
        %415 = vmatpush.msra.mxu0 %v238
        %416 = vmatpush.msra.mxu0 %v237
        %417 = vmatmul.f32.gmra.mxu0 %v319
        %v418 = vpop.f32.mrf.mxu0
        %v419 = vadd.f32 %v297, %v418
        %420 = vdwg.mxu0
        %421 = vmatpush.msra.mxu0 0.0
        %422 = vmatpush.msra.mxu0 0.0
        %423 = vmatpush.msra.mxu0 0.0
        %424 = vmatpush.msra.mxu0 0.0
        %425 = vmatpush.msra.mxu0 0.0
        %426 = vmatpush.msra.mxu0 0.0
        %427 = vmatpush.msra.mxu0 0.0
        %428 = vmatpush.msra.mxu0 0.0
        %429 = vmatpush.msra.mxu0 0.0
        %430 = vmatpush.msra.mxu0 0.0
        %431 = vmatpush.msra.mxu0 0.0
        %432 = vmatpush.msra.mxu0 0.0
        %433 = vmatpush.msra.mxu0 %v244
        %434 = vmatpush.msra.mxu0 %v243
        %435 = vmatpush.msra.mxu0 %v242
        %436 = vmatpush.msra.mxu0 %v241
        %437 = vmatmul.f32.gmra.mxu0 %v319
        %v438 = vpop.f32.mrf.mxu0
        %v439 = vadd.f32 %v298, %v438
        %440 = vdwg.mxu0
        %441 = vmatpush.msra.mxu0 0.0
        %442 = vmatpush.msra.mxu0 0.0
        %443 = vmatpush.msra.mxu0 0.0
        %444 = vmatpush.msra.mxu0 0.0
        %445 = vmatpush.msra.mxu0 0.0
        %446 = vmatpush.msra.mxu0 0.0
        %447 = vmatpush.msra.mxu0 0.0
        %448 = vmatpush.msra.mxu0 0.0
        %449 = vmatpush.msra.mxu0 0.0
        %450 = vmatpush.msra.mxu0 0.0
        %451 = vmatpush.msra.mxu0 0.0
        %452 = vmatpush.msra.mxu0 0.0
        %453 = vmatpush.msra.mxu0 %v248
        %454 = vmatpush.msra.mxu0 %v247
        %455 = vmatpush.msra.mxu0 %v246
        %456 = vmatpush.msra.mxu0 %v245
        %457 = vmatmul.f32.gmra.mxu0 %v319
        %v458 = vpop.f32.mrf.mxu0
        %v459 = vadd.f32 %v299, %v458
        %460 = vdwg.mxu0
        %461 = vmatpush.msra.mxu0 0.0
        %462 = vmatpush.msra.mxu0 0.0
        %463 = vmatpush.msra.mxu0 0.0
        %464 = vmatpush.msra.mxu0 0.0
        %465 = vmatpush.msra.mxu0 0.0
        %466 = vmatpush.msra.mxu0 0.0
        %467 = vmatpush.msra.mxu0 0.0
        %468 = vmatpush.msra.mxu0 0.0
        %469 = vmatpush.msra.mxu0 0.0
        %470 = vmatpush.msra.mxu0 0.0
        %471 = vmatpush.msra.mxu0 0.0
        %472 = vmatpush.msra.mxu0 0.0
        %473 = vmatpush.msra.mxu0 %v252
        %474 = vmatpush.msra.mxu0 %v251
        %475 = vmatpush.msra.mxu0 %v250
        %476 = vmatpush.msra.mxu0 %v249
        %477 = vmatmul.f32.gmra.mxu0 %v319
        %v478 = vpop.f32.mrf.mxu0
        %v479 = vadd.f32 %v300, %v478
        %480 = vdwg.mxu0
        %481 = vmatpush.msra.mxu0 0.0
        %482 = vmatpush.msra.mxu0 0.0
        %483 = vmatpush.msra.mxu0 0.0
        %484 = vmatpush.msra.mxu0 0.0
        %485 = vmatpush.msra.mxu0 0.0
        %486 = vmatpush.msra.mxu0 0.0
        %487 = vmatpush.msra.mxu0 0.0
        %488 = vmatpush.msra.mxu0 0.0
        %489 = vmatpush.msra.mxu0 0.0
        %490 = vmatpush.msra.mxu0 0.0
        %491 = vmatpush.msra.mxu0 0.0
        %492 = vmatpush.msra.mxu0 0.0
        %493 = vmatpush.msra.mxu0 %v256
        %494 = vmatpush.msra.mxu0 %v255
        %495 = vmatpush.msra.mxu0 %v254
        %496 = vmatpush.msra.mxu0 %v253
        %497 = vmatmul.f32.gmra.mxu0 %v319
        %v498 = vpop.f32.mrf.mxu0
        %v499 = vadd.f32 %v301, %v498
        %500 = vdwg.mxu0
        %501 = vmatpush.msra.mxu0 0.0
        %502 = vmatpush.msra.mxu0 0.0
        %503 = vmatpush.msra.mxu0 0.0
        %504 = vmatpush.msra.mxu0 0.0
        %505 = vmatpush.msra.mxu0 0.0
        %506 = vmatpush.msra.mxu0 0.0
        %507 = vmatpush.msra.mxu0 0.0
        %508 = vmatpush.msra.mxu0 0.0
        %509 = vmatpush.msra.mxu0 0.0
        %510 = vmatpush.msra.mxu0 0.0
        %511 = vmatpush.msra.mxu0 0.0
        %512 = vmatpush.msra.mxu0 0.0
        %513 = vmatpush.msra.mxu0 %v260
        %514 = vmatpush.msra.mxu0 %v259
        %515 = vmatpush.msra.mxu0 %v258
        %516 = vmatpush.msra.mxu0 %v257
        %517 = vmatmul.f32.gmra.mxu0 %v319
        %v518 = vpop.f32.mrf.mxu0
        %v519 = vadd.f32 %v302, %v518
        %520 = vdwg.mxu0
        %521 = vmatpush.msra.mxu0 0.0
        %522 = vmatpush.msra.mxu0 0.0
        %523 = vmatpush.msra.mxu0 0.0
        %524 = vmatpush.msra.mxu0 0.0
        %525 = vmatpush.msra.mxu0 0.0
        %526 = vmatpush.msra.mxu0 0.0
        %527 = vmatpush.msra.mxu0 0.0
        %528 = vmatpush.msra.mxu0 0.0
        %529 = vmatpush.msra.mxu0 0.0
        %530 = vmatpush.msra.mxu0 0.0
        %531 = vmatpush.msra.mxu0 0.0
        %532 = vmatpush.msra.mxu0 0.0
        %533 = vmatpush.msra.mxu0 %v264
        %534 = vmatpush.msra.mxu0 %v263
        %535 = vmatpush.msra.mxu0 %v262
        %536 = vmatpush.msra.mxu0 %v261
        %537 = vmatmul.f32.gmra.mxu0 %v319
        %v538 = vpop.f32.mrf.mxu0
        %v539 = vadd.f32 %v303, %v538
        %540 = vdwg.mxu0
        %541 = vmatpush.msra.mxu0 0.0
        %542 = vmatpush.msra.mxu0 0.0
        %543 = vmatpush.msra.mxu0 0.0
        %544 = vmatpush.msra.mxu0 0.0
        %545 = vmatpush.msra.mxu0 0.0
        %546 = vmatpush.msra.mxu0 0.0
        %547 = vmatpush.msra.mxu0 0.0
        %548 = vmatpush.msra.mxu0 0.0
        %549 = vmatpush.msra.mxu0 0.0
        %550 = vmatpush.msra.mxu0 0.0
        %551 = vmatpush.msra.mxu0 0.0
        %552 = vmatpush.msra.mxu0 0.0
        %553 = vmatpush.msra.mxu0 %v268
        %554 = vmatpush.msra.mxu0 %v267
        %555 = vmatpush.msra.mxu0 %v266
        %556 = vmatpush.msra.mxu0 %v265
        %557 = vmatmul.f32.gmra.mxu0 %v319
        %v558 = vpop.f32.mrf.mxu0
        %v559 = vadd.f32 %v304, %v558
        %560 = vdwg.mxu0
        %vm561 = vcmask 64512
        %v563 = vsel %vm561, %v339, 0
        %v566 = vsel %vm561, %v419, 0
        %568 = vmatpush.xpose.msra.mxu0 0.0
        %569 = vmatpush.xpose.msra.mxu0 0.0
        %570 = vmatpush.xpose.msra.mxu0 0.0
        %571 = vmatpush.xpose.msra.mxu0 0.0
        %572 = vmatpush.xpose.msra.mxu0 0.0
        %573 = vmatpush.xpose.msra.mxu0 0.0
        %574 = vmatpush.xpose.msra.mxu0 0.0
        %575 = vmatpush.xpose.msra.mxu0 0.0
        %576 = vmatpush.xpose.msra.mxu0 0.0
        %577 = vmatpush.xpose.msra.mxu0 0.0
        %578 = vmatpush.xpose.msra.mxu0 0.0
        %579 = vmatpush.xpose.msra.mxu0 0.0
        %580 = vmatpush.xpose.msra.mxu0 0.0
        %581 = vmatpush.xpose.msra.mxu0 0.0
        %582 = vmatpush.xpose.msra.mxu0 0.0
        %583 = vmatpush.xpose.msra.mxu0 %v566
        %584 = vmatmul.f32.gmra.mxu0 %v563
        %v585 = vpop.f32.mrf.mxu0
        %v586 = vadd.f32 0.0, %v585
        %587 = vdwg.mxu0
        %v589 = vsel %vm561, %v359, 0
        %v592 = vsel %vm561, %v439, 0
        %594 = vmatpush.xpose.msra.mxu0 0.0
        %595 = vmatpush.xpose.msra.mxu0 0.0
        %596 = vmatpush.xpose.msra.mxu0 0.0
        %597 = vmatpush.xpose.msra.mxu0 0.0
        %598 = vmatpush.xpose.msra.mxu0 0.0
        %599 = vmatpush.xpose.msra.mxu0 0.0
        %600 = vmatpush.xpose.msra.mxu0 0.0
        %601 = vmatpush.xpose.msra.mxu0 0.0
        %602 = vmatpush.xpose.msra.mxu0 0.0
        %603 = vmatpush.xpose.msra.mxu0 0.0
        %604 = vmatpush.xpose.msra.mxu0 0.0
        %605 = vmatpush.xpose.msra.mxu0 0.0
        %606 = vmatpush.xpose.msra.mxu0 0.0
        %607 = vmatpush.xpose.msra.mxu0 0.0
        %608 = vmatpush.xpose.msra.mxu0 0.0
        %609 = vmatpush.xpose.msra.mxu0 %v592
        %610 = vmatmul.f32.gmra.mxu0 %v589
        %v611 = vpop.f32.mrf.mxu0
        %v612 = vadd.f32 0.0, %v611
        %613 = vdwg.mxu0
        %v615 = vsel %vm561, %v379, 0
        %v618 = vsel %vm561, %v459, 0
        %620 = vmatpush.xpose.msra.mxu0 0.0
        %621 = vmatpush.xpose.msra.mxu0 0.0
        %622 = vmatpush.xpose.msra.mxu0 0.0
        %623 = vmatpush.xpose.msra.mxu0 0.0
        %624 = vmatpush.xpose.msra.mxu0 0.0
        %625 = vmatpush.xpose.msra.mxu0 0.0
        %626 = vmatpush.xpose.msra.mxu0 0.0
        %627 = vmatpush.xpose.msra.mxu0 0.0
        %628 = vmatpush.xpose.msra.mxu0 0.0
        %629 = vmatpush.xpose.msra.mxu0 0.0
        %630 = vmatpush.xpose.msra.mxu0 0.0
        %631 = vmatpush.xpose.msra.mxu0 0.0
        %632 = vmatpush.xpose.msra.mxu0 0.0
        %633 = vmatpush.xpose.msra.mxu0 0.0
        %634 = vmatpush.xpose.msra.mxu0 0.0
        %635 = vmatpush.xpose.msra.mxu0 %v618
        %636 = vmatmul.f32.gmra.mxu0 %v615
        %v637 = vpop.f32.mrf.mxu0
        %v638 = vadd.f32 0.0, %v637
        %639 = vdwg.mxu0
        %v641 = vsel %vm561, %v399, 0
        %v644 = vsel %vm561, %v479, 0
        %646 = vmatpush.xpose.msra.mxu0 0.0
        %647 = vmatpush.xpose.msra.mxu0 0.0
        %648 = vmatpush.xpose.msra.mxu0 0.0
        %649 = vmatpush.xpose.msra.mxu0 0.0
        %650 = vmatpush.xpose.msra.mxu0 0.0
        %651 = vmatpush.xpose.msra.mxu0 0.0
        %652 = vmatpush.xpose.msra.mxu0 0.0
        %653 = vmatpush.xpose.msra.mxu0 0.0
        %654 = vmatpush.xpose.msra.mxu0 0.0
        %655 = vmatpush.xpose.msra.mxu0 0.0
        %656 = vmatpush.xpose.msra.mxu0 0.0
        %657 = vmatpush.xpose.msra.mxu0 0.0
        %658 = vmatpush.xpose.msra.mxu0 0.0
        %659 = vmatpush.xpose.msra.mxu0 0.0
        %660 = vmatpush.xpose.msra.mxu0 0.0
        %661 = vmatpush.xpose.msra.mxu0 %v644
        %662 = vmatmul.f32.gmra.mxu0 %v641
        %v663 = vpop.f32.mrf.mxu0
        %v664 = vadd.f32 0.0, %v663
        %665 = vdwg.mxu0
        %v666 = vmul.f32 %v586, 0.35355338
        %v667 = vmul.f32 %v612, 0.35355338
        %v668 = vmul.f32 %v638, 0.35355338
        %v669 = vmul.f32 %v664, 0.35355338
        %v670 = vsel %vm561, %v666, -inf
        %671 = vmax.xlane.f32.xlu0 %v670
        %v672 = vpop.xlane.xlu0 %671
        %v673 = vsel %vm561, %v667, -inf
        %674 = vmax.xlane.f32.xlu0 %v673
        %v675 = vpop.xlane.xlu0 %674
        %v676 = vsel %vm561, %v668, -inf
        %677 = vmax.xlane.f32.xlu0 %v676
        %v678 = vpop.xlane.xlu0 %677
        %v679 = vsel %vm561, %v669, -inf
        %680 = vmax.xlane.f32.xlu0 %v679
        %v681 = vpop.xlane.xlu0 %680
        %v682 = vsub.f32 %v666, %v672
        %v683 = vsub.f32 %v667, %v675
        %v684 = vsub.f32 %v668, %v678
        %v685 = vsub.f32 %v669, %v681
        %v686 = vmul.f32 %v682, 1.442695
        %v687 = vpow.pop %v686
        %v688 = vmul.f32 %v683, 1.442695
        %v689 = vpow.pop %v688
        %v690 = vmul.f32 %v684, 1.442695
        %v691 = vpow.pop %v690
        %v692 = vmul.f32 %v685, 1.442695
        %v693 = vpow.pop %v692
        %v694 = vsel %vm561, %v687, 0.0
        %695 = vadd.xlane.f32.xlu0 %v694
        %v696 = vpop.xlane.xlu0 %695
        %v697 = vsel %vm561, %v689, 0.0
        %698 = vadd.xlane.f32.xlu0 %v697
        %v699 = vpop.xlane.xlu0 %698
        %v700 = vsel %vm561, %v691, 0.0
        %701 = vadd.xlane.f32.xlu0 %v700
        %v702 = vpop.xlane.xlu0 %701
        %v703 = vsel %vm561, %v693, 0.0
        %704 = vadd.xlane.f32.xlu0 %v703
        %v705 = vpop.xlane.xlu0 %704
        %v706 = vrcp.pop %v696
        %v707 = vmul.f32 %v696, %v706
        %v708 = vsub.f32 1.0, %v707
        %v709 = vmul.f32 %v706, %v708
        %v710 = vadd.f32 %v706, %v709
        %vm711 = vweird.f32 %v696
        %vm712 = vweird.f32 %v706
        %vm713 = vmor %vm711, %vm712
        %v714 = vsel %vm713, %v706, %v710
        %v715 = vand.u32 2147483647, %v696
        %vm716 = vcmp.eq.f32.partialorder %v715, 8.507059e+37
        %v717 = vand.u32 %v696, 2147483648
        %v718 = vor.u32 1.1754944e-38, %v717
        %v719 = vsel %vm716, %v718, %v714
        %v720 = vmul.f32 %v687, %v719
        %v721 = vrcp.pop %v699
        %v722 = vmul.f32 %v699, %v721
        %v723 = vsub.f32 1.0, %v722
        %v724 = vmul.f32 %v721, %v723
        %v725 = vadd.f32 %v721, %v724
        %vm726 = vweird.f32 %v699
        %vm727 = vweird.f32 %v721
        %vm728 = vmor %vm726, %vm727
        %v729 = vsel %vm728, %v721, %v725
        %v730 = vand.u32 2147483647, %v699
        %vm731 = vcmp.eq.f32.partialorder %v730, 8.507059e+37
        %v732 = vand.u32 %v699, 2147483648
        %v733 = vor.u32 1.1754944e-38, %v732
        %v734 = vsel %vm731, %v733, %v729
        %v735 = vmul.f32 %v689, %v734
        %v736 = vrcp.pop %v702
        %v737 = vmul.f32 %v702, %v736
        %v738 = vsub.f32 1.0, %v737
        %v739 = vmul.f32 %v736, %v738
        %v740 = vadd.f32 %v736, %v739
        %vm741 = vweird.f32 %v702
        %vm742 = vweird.f32 %v736
        %vm743 = vmor %vm741, %vm742
        %v744 = vsel %vm743, %v736, %v740
        %v745 = vand.u32 2147483647, %v702
        %vm746 = vcmp.eq.f32.partialorder %v745, 8.507059e+37
        %v747 = vand.u32 %v702, 2147483648
        %v748 = vor.u32 1.1754944e-38, %v747
        %v749 = vsel %vm746, %v748, %v744
        %v750 = vmul.f32 %v691, %v749
        %v751 = vrcp.pop %v705
        %v752 = vmul.f32 %v705, %v751
        %v753 = vsub.f32 1.0, %v752
        %v754 = vmul.f32 %v751, %v753
        %v755 = vadd.f32 %v751, %v754
        %vm756 = vweird.f32 %v705
        %vm757 = vweird.f32 %v751
        %vm758 = vmor %vm756, %vm757
        %v759 = vsel %vm758, %v751, %v755
        %v760 = vand.u32 2147483647, %v705
        %vm761 = vcmp.eq.f32.partialorder %v760, 8.507059e+37
        %v762 = vand.u32 %v705, 2147483648
        %v763 = vor.u32 1.1754944e-38, %v762
        %v764 = vsel %vm761, %v763, %v759
        %v765 = vmul.f32 %v693, %v764
        %v767 = vsel %vm561, %v720, 0
        %769 = vmatpush.msra.mxu0 0.0
        %770 = vmatpush.msra.mxu0 0.0
        %771 = vmatpush.msra.mxu0 0.0
        %772 = vmatpush.msra.mxu0 0.0
        %773 = vmatpush.msra.mxu0 0.0
        %774 = vmatpush.msra.mxu0 0.0
        %775 = vmatpush.msra.mxu0 0.0
        %776 = vmatpush.msra.mxu0 0.0
        %777 = vmatpush.msra.mxu0 0.0
        %778 = vmatpush.msra.mxu0 0.0
        %779 = vmatpush.msra.mxu0 0.0
        %780 = vmatpush.msra.mxu0 0.0
        %781 = vmatpush.msra.mxu0 0.0
        %782 = vmatpush.msra.mxu0 0.0
        %783 = vmatpush.msra.mxu0 0.0
        %784 = vmatpush.msra.mxu0 %v499
        %785 = vmatmul.f32.gmra.mxu0 %v767
        %v786 = vpop.f32.mrf.mxu0
        %v787 = vadd.f32 0.0, %v786
        %788 = vdwg.mxu0
        %v790 = vsel %vm561, %v735, 0
        %792 = vmatpush.msra.mxu0 0.0
        %793 = vmatpush.msra.mxu0 0.0
        %794 = vmatpush.msra.mxu0 0.0
        %795 = vmatpush.msra.mxu0 0.0
        %796 = vmatpush.msra.mxu0 0.0
        %797 = vmatpush.msra.mxu0 0.0
        %798 = vmatpush.msra.mxu0 0.0
        %799 = vmatpush.msra.mxu0 0.0
        %800 = vmatpush.msra.mxu0 0.0
        %801 = vmatpush.msra.mxu0 0.0
        %802 = vmatpush.msra.mxu0 0.0
        %803 = vmatpush.msra.mxu0 0.0
        %804 = vmatpush.msra.mxu0 0.0
        %805 = vmatpush.msra.mxu0 0.0
        %806 = vmatpush.msra.mxu0 0.0
        %807 = vmatpush.msra.mxu0 %v519
        %808 = vmatmul.f32.gmra.mxu0 %v790
        %v809 = vpop.f32.mrf.mxu0
        %v810 = vadd.f32 0.0, %v809
        %811 = vdwg.mxu0
        %v813 = vsel %vm561, %v750, 0
        %815 = vmatpush.msra.mxu0 0.0
        %816 = vmatpush.msra.mxu0 0.0
        %817 = vmatpush.msra.mxu0 0.0
        %818 = vmatpush.msra.mxu0 0.0
        %819 = vmatpush.msra.mxu0 0.0
        %820 = vmatpush.msra.mxu0 0.0
        %821 = vmatpush.msra.mxu0 0.0
        %822 = vmatpush.msra.mxu0 0.0
        %823 = vmatpush.msra.mxu0 0.0
        %824 = vmatpush.msra.mxu0 0.0
        %825 = vmatpush.msra.mxu0 0.0
        %826 = vmatpush.msra.mxu0 0.0
        %827 = vmatpush.msra.mxu0 0.0
        %828 = vmatpush.msra.mxu0 0.0
        %829 = vmatpush.msra.mxu0 0.0
        %830 = vmatpush.msra.mxu0 %v539
        %831 = vmatmul.f32.gmra.mxu0 %v813
        %v832 = vpop.f32.mrf.mxu0
        %v833 = vadd.f32 0.0, %v832
        %834 = vdwg.mxu0
        %v836 = vsel %vm561, %v765, 0
        %838 = vmatpush.msra.mxu0 0.0
        %839 = vmatpush.msra.mxu0 0.0
        %840 = vmatpush.msra.mxu0 0.0
        %841 = vmatpush.msra.mxu0 0.0
        %842 = vmatpush.msra.mxu0 0.0
        %843 = vmatpush.msra.mxu0 0.0
        %844 = vmatpush.msra.mxu0 0.0
        %845 = vmatpush.msra.mxu0 0.0
        %846 = vmatpush.msra.mxu0 0.0
        %847 = vmatpush.msra.mxu0 0.0
        %848 = vmatpush.msra.mxu0 0.0
        %849 = vmatpush.msra.mxu0 0.0
        %850 = vmatpush.msra.mxu0 0.0
        %851 = vmatpush.msra.mxu0 0.0
        %852 = vmatpush.msra.mxu0 0.0
        %853 = vmatpush.msra.mxu0 %v559
        %854 = vmatmul.f32.gmra.mxu0 %v836
        %v855 = vpop.f32.mrf.mxu0
        %v856 = vadd.f32 0.0, %v855
        %857 = vdwg.mxu0
        %v858 = vld [vmem:[%s3] sm:$0xff]
        %v859 = vld [vmem:[%s3 + $0x8] sm:$0xff]
        %v860 = vld [vmem:[%s3 + $0x10] sm:$0xff]
        %v861 = vld [vmem:[%s3 + $0x18] sm:$0xff]
        %v863 = vsel %vm561, %v787, 0
        %865 = vmatpush.msra.mxu0 0.0
        %866 = vmatpush.msra.mxu0 0.0
        %867 = vmatpush.msra.mxu0 0.0
        %868 = vmatpush.msra.mxu0 0.0
        %869 = vmatpush.msra.mxu0 0.0
        %870 = vmatpush.msra.mxu0 0.0
        %871 = vmatpush.msra.mxu0 0.0
        %872 = vmatpush.msra.mxu0 0.0
        %873 = vmatpush.msra.mxu0 0.0
        %874 = vmatpush.msra.mxu0 0.0
        %875 = vmatpush.msra.mxu0 0.0
        %876 = vmatpush.msra.mxu0 0.0
        %877 = vmatpush.msra.mxu0 0.0
        %878 = vmatpush.msra.mxu0 0.0
        %879 = vmatpush.msra.mxu0 0.0
        %880 = vmatpush.msra.mxu0 %v858
        %881 = vmatmul.f32.gmra.mxu0 %v863
        %v882 = vpop.f32.mrf.mxu0
        %v883 = vadd.f32 0.0, %v882
        %884 = vdwg.mxu0
        %v886 = vsel %vm561, %v810, 0
        %888 = vmatpush.msra.mxu0 0.0
        %889 = vmatpush.msra.mxu0 0.0
        %890 = vmatpush.msra.mxu0 0.0
        %891 = vmatpush.msra.mxu0 0.0
        %892 = vmatpush.msra.mxu0 0.0
        %893 = vmatpush.msra.mxu0 0.0
        %894 = vmatpush.msra.mxu0 0.0
        %895 = vmatpush.msra.mxu0 0.0
        %896 = vmatpush.msra.mxu0 0.0
        %897 = vmatpush.msra.mxu0 0.0
        %898 = vmatpush.msra.mxu0 0.0
        %899 = vmatpush.msra.mxu0 0.0
        %900 = vmatpush.msra.mxu0 0.0
        %901 = vmatpush.msra.mxu0 0.0
        %902 = vmatpush.msra.mxu0 0.0
        %903 = vmatpush.msra.mxu0 %v859
        %904 = vmatmul.f32.gmra.mxu0 %v886
        %v905 = vpop.f32.mrf.mxu0
        %v906 = vadd.f32 0.0, %v905
        %907 = vdwg.mxu0
        %v909 = vsel %vm561, %v833, 0
        %911 = vmatpush.msra.mxu0 0.0
        %912 = vmatpush.msra.mxu0 0.0
        %913 = vmatpush.msra.mxu0 0.0
        %914 = vmatpush.msra.mxu0 0.0
        %915 = vmatpush.msra.mxu0 0.0
        %916 = vmatpush.msra.mxu0 0.0
        %917 = vmatpush.msra.mxu0 0.0
        %918 = vmatpush.msra.mxu0 0.0
        %919 = vmatpush.msra.mxu0 0.0
        %920 = vmatpush.msra.mxu0 0.0
        %921 = vmatpush.msra.mxu0 0.0
        %922 = vmatpush.msra.mxu0 0.0
        %923 = vmatpush.msra.mxu0 0.0
        %924 = vmatpush.msra.mxu0 0.0
        %925 = vmatpush.msra.mxu0 0.0
        %926 = vmatpush.msra.mxu0 %v860
        %927 = vmatmul.f32.gmra.mxu0 %v909
        %v928 = vpop.f32.mrf.mxu0
        %v929 = vadd.f32 0.0, %v928
        %930 = vdwg.mxu0
        %v932 = vsel %vm561, %v856, 0
        %934 = vmatpush.msra.mxu0 0.0
        %935 = vmatpush.msra.mxu0 0.0
        %936 = vmatpush.msra.mxu0 0.0
        %937 = vmatpush.msra.mxu0 0.0
        %938 = vmatpush.msra.mxu0 0.0
        %939 = vmatpush.msra.mxu0 0.0
        %940 = vmatpush.msra.mxu0 0.0
        %941 = vmatpush.msra.mxu0 0.0
        %942 = vmatpush.msra.mxu0 0.0
        %943 = vmatpush.msra.mxu0 0.0
        %944 = vmatpush.msra.mxu0 0.0
        %945 = vmatpush.msra.mxu0 0.0
        %946 = vmatpush.msra.mxu0 0.0
        %947 = vmatpush.msra.mxu0 0.0
        %948 = vmatpush.msra.mxu0 0.0
        %949 = vmatpush.msra.mxu0 %v861
        %950 = vmatmul.f32.gmra.mxu0 %v932
        %v951 = vpop.f32.mrf.mxu0
        %v952 = vadd.f32 0.0, %v951
        %953 = vdwg.mxu0
        %v954 = vsel %vm317, %v883, 0.0
        %v955 = vsel %vm317, %v906, 0.0
        %v956 = vadd.f32 %v954, %v955
        %v957 = vsel %vm317, %v929, 0.0
        %v958 = vadd.f32 %v956, %v957
        %v959 = vsel %vm317, %v952, 0.0
        %v960 = vadd.f32 %v958, %v959
        %v961 = vld [vmem:[%s4] sm:$0x1]
        %v963 = vperm.slane %v961, 0
        %v965 = vadd.f32 %v960, %v963
        %966 = vst.msk [vmem:[%s215] sm:$0xff] %vm317, %v965
        %s967 = sand.u32 %s137, 1
        %s968 = scalar_lea.sflag [#allocation3], %s967
        %s969 = sand.u32 %s137, 1
        %s970 = smul.addr %s969, 8
        %s971 = scalar_lea.vmem [#allocation2], %s970
        // Predicated region
        $region41: #{tpu_custom_call.1} parent=39 // pred_check
          %p972 = pneg %p147
        $region42: #{tpu_custom_call.1} parent=39 // pred_check_branch
          %974 = sbr.rel (%p972) target = $region44
        $region43: #{tpu_custom_call.1} parent=39 // pred_region
          %976 = vsyncadd %s968, 0
          %s977 = smul.addr %s19, 8
          %s978 = scalar_lea.hbm %s5, %s977
          %s980 = sshll.u32 %s971, 4
          %s981 = int_to_ptr.vmem [resolvable:$true] %s980
          %s982 = sshll.u32 %s978, 4
          %s983 = int_to_ptr.hbm [resolvable:$true] %s982
          %985 = dma.vmem_to_hbm [thread:$0]  %s981, 128, %s983, %s968
        $region44: #{tpu_custom_call.1} parent=39 // pred_fallthru
          _
      $region40: #{tpu_custom_call.1} parent=5 // pred_fallthru
        _
      %p986 = scmp.le.s32.totalorder 2, %s14
      // Predicated region
      $region45: #{tpu_custom_call.1} parent=5 // pred_check
        %p987 = pneg %p986
      $region46: #{tpu_custom_call.1} parent=5 // pred_check_branch
        %989 = sbr.rel (%p987) target = $region48
      $region47: #{tpu_custom_call.1} parent=5 // pred_region
        %s990 = ssub.s32 %s14, 2
        // Predicated region
        $region49: #{tpu_custom_call.1} parent=47 // pred_check
          %p991 = pneg %p153
        $region50: #{tpu_custom_call.1} parent=47 // pred_check_branch
          %993 = sbr.rel (%p991) target = $region52
        $region51: #{tpu_custom_call.1} parent=47 // pred_region
          %s994 = sand.u32 %s138, 1
          %s995 = scalar_lea.sflag [#allocation3], %s994
          %s996 = sand.u32 %s138, 1
          %s997 = smul.addr %s996, 8
          %s998 = scalar_lea.vmem [#allocation2], %s997
          %1000 = dma.done %s995, 128
        $region52: #{tpu_custom_call.1} parent=47 // pred_fallthru
          _
      $region48: #{tpu_custom_call.1} parent=5 // pred_fallthru
        _
    $region6: #{tpu_custom_call.1} parent=1 // loop_footer
      %s18 = sadd.s32 1, %s14
    $region7: #{tpu_custom_call.1} parent=1 // loop_footer_branch
      %13 = sbr.rel target = $region3
    $region8: #{tpu_custom_call.1} parent=1 // loop_exit
      _
    %1001 = vsyncpa [#allocation3], 1
    %s1002 = scalar_lea.sflag [#allocation3], 1
    %1003 = vsyncpa %s1002, 1

</llo_original>
